<compile_context>
chip_gen: v6e
topology: v6e:2x2x1
jax: 0.10.0
libtpu: 0.0.40
codegen_flags: <defaults>
</compile_context>

<pallas_src>
import jax
import jax.numpy as jnp
from jax.experimental import pallas as pl
from jax.experimental.pallas import tpu as pltpu

_LANE = 128
_SUBLANE = 8
_F32_MIN = float(jnp.finfo(jnp.float32).min)
_ROWS_CAP = 1024          # diminishing returns past ~512-1024 rows per tile
_Q_ALIGN = 32             # safe sublane granularity for the int8 mask tiling


def _round_up(n, m):
    return (n + m - 1) // m * m


def _masked_softmax_kernel(x_ref, m_ref, o_ref):
    # x_ref / o_ref: (th, tq, Sk);  m_ref: (1, tq, Sk) int8 (broadcast over heads).
    x = x_ref[...].astype(jnp.float32)
    x = jnp.where(m_ref[...] != 0, _F32_MIN, x)
    x_max = jnp.max(x, axis=-1, keepdims=True)
    e = jnp.exp(x - x_max)
    denom = jnp.sum(e, axis=-1, keepdims=True)
    o_ref[...] = (e * pl.reciprocal(denom, approx=False)).astype(o_ref.dtype)


def _softmax_kernel(x_ref, o_ref):
    # No-mask variant: zero mask traffic.
    x = x_ref[...].astype(jnp.float32)
    x_max = jnp.max(x, axis=-1, keepdims=True)
    e = jnp.exp(x - x_max)
    denom = jnp.sum(e, axis=-1, keepdims=True)
    o_ref[...] = (e * pl.reciprocal(denom, approx=False)).astype(o_ref.dtype)


def _vmem_budgets():
    """Generation-aware (tile_budget_bytes, vmem_ceiling_bytes)."""
    vmem_cap = 64 * 1024 * 1024          # conservative default (v7x: 64 MiB / TC)
    try:
        cap = getattr(pltpu.get_tpu_info(), "vmem_capacity_bytes", None)
        if cap:
            vmem_cap = int(cap)
    except Exception:
        pass
    if vmem_cap >= 100 * 1024 * 1024:    # v5e / v6e: 128 MiB physical
        return 12 * 1024 * 1024, 64 * 1024 * 1024
    return 6 * 1024 * 1024, 48 * 1024 * 1024   # v7x: 64 MiB physical


def _choose_tiles(H, Sq, Sk, itemsize, has_mask, tile_budget):
    """Pick (th, tq).  The budget counts the *real* working set: double-
    buffered input and output tiles, the shared (double-buffered) int8 mask
    tile and ~two full-tile f32 temporaries produced by the kernel body."""
    sk_vmem = _round_up(Sk, _LANE)                       # lane padding in VMEM
    per_row = sk_vmem * (2 * itemsize + 2 * itemsize + 2 * 4)
    mask_per_row = 2 * sk_vmem if has_mask else 0        # shared across th heads
    rows_budget = max(1, tile_budget // (per_row + mask_per_row))

    if Sq <= min(rows_budget, _ROWS_CAP) or Sq <= _Q_ALIGN:
        tq = Sq                                          # full dim: legal at any alignment
    else:
        tq = min(Sq, max(_Q_ALIGN,
                         (min(_ROWS_CAP, rows_budget) // _Q_ALIGN) * _Q_ALIGN))

    th = 1
    while (H % (th * 2) == 0
           and (th * 2) * tq * per_row + tq * mask_per_row <= tile_budget
           and (th * 2) * tq <= 2 * _ROWS_CAP):
        th *= 2
    return th, tq


def masked_softmax(x, mask=None, *, _tq=None, _th=None):
    """MaskedSoftmax.forward.

    x    : [B, H, Sq, Sk] float array (attention scores)
    mask : bool array broadcastable to [B, 1, Sq, Sk] (True = masked out), or None
    """
    B, H, Sq, Sk = x.shape
    out_dtype = x.dtype
    itemsize = jnp.dtype(x.dtype).itemsize
    has_mask = mask is not None

    tile_budget, vmem_ceiling = _vmem_budgets()
    th, tq = _choose_tiles(H, Sq, Sk, itemsize, has_mask, tile_budget)
    if _tq is not None:
        tq = _tq
    if _th is not None:
        th = _th
    nq = pl.cdiv(Sq, tq)

    # Honest footprint of the chosen tiles; raise the scoped-VMEM limit when a
    # minimum-size tile overshoots the budget (never below the 32 MiB default,
    # never above the generation ceiling).
    sk_vmem = _round_up(Sk, _LANE)
    footprint = (th * tq * sk_vmem * (4 * itemsize + 8)
                 + (2 * tq * sk_vmem if has_mask else 0))
    vmem_limit = int(min(vmem_ceiling,
                         max(32 * 1024 * 1024, footprint + 8 * 1024 * 1024)))

    # Head-block axis innermost: the mask block index does not depend on h, so
    # Pallas skips the mask DMA between consecutive steps.
    grid = (B, nq, H // th)
    x_spec = pl.BlockSpec((pl.Squeezed(), th, tq, Sk), lambda b, q, h: (b, h, q, 0))
    out_spec = pl.BlockSpec((pl.Squeezed(), th, tq, Sk), lambda b, q, h: (b, h, q, 0))
    compiler_params = pltpu.CompilerParams(
        dimension_semantics=("parallel", "parallel", "parallel"),
        vmem_limit_bytes=vmem_limit,
    )
    out_shape = jax.ShapeDtypeStruct((B, H, Sq, Sk), out_dtype)

    if mask is None:
        return pl.pallas_call(
            _softmax_kernel,
            out_shape=out_shape,
            grid=grid,
            in_specs=[x_spec],
            out_specs=out_spec,
            compiler_params=compiler_params,
        )(x)

    # Mask stays un-broadcast over heads ([B, 1, Sq, Sk]) and narrow (int8);
    # only touch it if shape/dtype actually need fixing.
    m = jnp.asarray(mask)
    if m.shape != (B, 1, Sq, Sk):
        m = jnp.broadcast_to(m, (B, 1, Sq, Sk))
    if m.dtype != jnp.int8:
        m = m.astype(jnp.int8)            # bool -> int8: 1-byte cast, tiny vs x traffic
    m_spec = pl.BlockSpec((pl.Squeezed(), 1, tq, Sk), lambda b, q, h: (b, 0, q, 0))
    return pl.pallas_call(
        _masked_softmax_kernel,
        out_shape=out_shape,
        grid=grid,
        in_specs=[x_spec, m_spec],
        out_specs=out_spec,
        compiler_params=compiler_params,
    )(x, m)


def masked_softmax_ref(x, mask):
    x32 = x.astype(jnp.float32)
    if mask is not None:
        x32 = jnp.where(jnp.broadcast_to(mask, x32.shape),
                        jnp.finfo(jnp.float32).min, x32)
    return jax.nn.softmax(x32, axis=-1).astype(x.dtype)


if __name__ == "__main__":
    key = jax.random.PRNGKey(0)
    k1, k2, k3, k4, k5, k6 = jax.random.split(key, 6)

    # Case 1: f32 scores with a broadcast [B,1,Sq,Sk] boolean mask.
    B, H, Sq, Sk = 2, 4, 16, 16
    x = jax.random.normal(k1, (B, H, Sq, Sk), dtype=jnp.float32)
    mask = jax.random.bernoulli(k2, p=0.3, shape=(B, 1, Sq, Sk))
    out = jax.block_until_ready(masked_softmax(x, mask))
    ref = masked_softmax_ref(x, mask)
    assert out.shape == (B, H, Sq, Sk) and out.dtype == x.dtype
    assert jnp.allclose(out, ref, atol=1e-5, rtol=1e-5), "case 1 mismatch vs reference"

    # Case 2: ragged shapes (Sq not multiple of 8, Sk not multiple of 128), bf16
    # scores — full-extent unaligned blocks, no XLA pad/slice round trips.
    B2, H2, Sq2, Sk2 = 1, 2, 13, 40
    x2 = jax.random.normal(k3, (B2, H2, Sq2, Sk2), dtype=jnp.float32).astype(jnp.bfloat16)
    mask2 = jax.random.bernoulli(k4, p=0.5, shape=(B2, 1, Sq2, Sk2))
    out2 = jax.block_until_ready(masked_softmax(x2, mask2))
    ref2 = masked_softmax_ref(x2, mask2)
    assert out2.shape == x2.shape and out2.dtype == x2.dtype
    assert jnp.allclose(out2.astype(jnp.float32), ref2.astype(jnp.float32),
                        atol=2e-2, rtol=2e-2), "case 2 mismatch vs reference"

    # Case 3: mask=None path (no dummy mask traffic).
    out3 = jax.block_until_ready(masked_softmax(x, None))
    ref3 = masked_softmax_ref(x, None)
    assert jnp.allclose(out3, ref3, atol=1e-5, rtol=1e-5), "case 3 mismatch vs reference"

    # Case 4: force a partial last query block (Sq=40, tq=32) to exercise the
    # cdiv grid / clipped-boundary path introduced by removing the q padding.
    B4, H4, Sq4, Sk4 = 1, 2, 40, 128
    x4 = jax.random.normal(k5, (B4, H4, Sq4, Sk4), dtype=jnp.float32)
    mask4 = jax.random.bernoulli(k6, p=0.3, shape=(B4, 1, Sq4, Sk4))
    out4 = jax.block_until_ready(masked_softmax(x4, mask4, _tq=32, _th=1))
    ref4 = masked_softmax_ref(x4, mask4)
    assert jnp.allclose(out4, ref4, atol=1e-5, rtol=1e-5), "case 4 mismatch vs reference"

    print("KERNEL_OK")
</pallas_src>

<mosaic_0001>
module attributes {stable_mosaic.version = 11 : i64} {
  func.func @_masked_softmax_kernel(%arg0: i32, %arg1: i32, %arg2: i32, %arg3: memref<1x4x16x16xf32, #tpu.memory_space<vmem>>, %arg4: memref<1x1x16x16xi8, #tpu.memory_space<vmem>>, %arg5: memref<1x4x16x16xf32, #tpu.memory_space<vmem>>) attributes {dimension_semantics = [#tpu.dimension_semantics<parallel>, #tpu.dimension_semantics<parallel>, #tpu.dimension_semantics<parallel>], iteration_bounds = array<i64: 2, 1, 1>, scalar_prefetch = 0 : i64, scratch_operands = 0 : i64, tpu.core_type = #tpu.core_type<tc>, window_params = [{transform_indices = @transform_0, window_bounds = array<i64: 1, 4, 16, 16>}, {transform_indices = @transform_1, window_bounds = array<i64: 1, 1, 16, 16>}, {transform_indices = @transform_2, window_bounds = array<i64: 1, 4, 16, 16>}]} {
    %c0 = arith.constant 0 : index
    %c0_0 = arith.constant 0 : index
    %c0_1 = arith.constant 0 : index
    %c0_2 = arith.constant 0 : index
    %0 = vector.load %arg3[%c0, %c0_0, %c0_1, %c0_2] : memref<1x4x16x16xf32, #tpu.memory_space<vmem>>, vector<1x4x16x16xf32>
    %1 = vector.shape_cast %0 : vector<1x4x16x16xf32> to vector<4x16x16xf32>
    %c0_3 = arith.constant 0 : index
    %c0_4 = arith.constant 0 : index
    %c0_5 = arith.constant 0 : index
    %c0_6 = arith.constant 0 : index
    %2 = vector.load %arg4[%c0_3, %c0_4, %c0_5, %c0_6] : memref<1x1x16x16xi8, #tpu.memory_space<vmem>>, vector<1x1x16x16xi8>
    %3 = vector.shape_cast %2 : vector<1x1x16x16xi8> to vector<1x16x16xi8>
    %c0_i8 = arith.constant 0 : i8
    %4 = vector.broadcast %c0_i8 : i8 to vector<1x16x16xi8>
    %5 = arith.cmpi ne, %3, %4 : vector<1x16x16xi8>
    %cst = arith.constant -3.40282347E+38 : f32
    %6 = vector.shape_cast %5 : vector<1x16x16xi1> to vector<1x16x16xi1>
    %7 = vector.broadcast %6 : vector<1x16x16xi1> to vector<4x16x16xi1>
    %8 = vector.broadcast %cst : f32 to vector<4x16x16xf32>
    %9 = arith.select %7, %8, %1 : vector<4x16x16xi1>, vector<4x16x16xf32>
    %cst_7 = arith.constant dense<0xFF800000> : vector<4x16xf32>
    %10 = vector.multi_reduction <maximumf>, %9, %cst_7 [2] : vector<4x16x16xf32> to vector<4x16xf32>
    %11 = vector.shape_cast %10 : vector<4x16xf32> to vector<4x16x1xf32>
    %12 = vector.broadcast %11 : vector<4x16x1xf32> to vector<4x16x16xf32>
    %13 = arith.subf %9, %12 : vector<4x16x16xf32>
    %14 = math.exp %13 : vector<4x16x16xf32>
    %cst_8 = arith.constant dense<0.000000e+00> : vector<4x16xf32>
    %15 = vector.multi_reduction <add>, %14, %cst_8 [2] : vector<4x16x16xf32> to vector<4x16xf32>
    %16 = vector.shape_cast %15 : vector<4x16xf32> to vector<4x16x1xf32>
    %17 = tpu.reciprocal %16 : vector<4x16x1xf32> -> vector<4x16x1xf32>
    %18 = vector.broadcast %17 : vector<4x16x1xf32> to vector<4x16x16xf32>
    %19 = arith.mulf %14, %18 : vector<4x16x16xf32>
    %c0_9 = arith.constant 0 : index
    %c0_10 = arith.constant 0 : index
    %c0_11 = arith.constant 0 : index
    %c0_12 = arith.constant 0 : index
    %20 = vector.load %arg5[%c0_9, %c0_10, %c0_11, %c0_12] : memref<1x4x16x16xf32, #tpu.memory_space<vmem>>, vector<1x4x16x16xf32>
    %21 = vector.shape_cast %20 : vector<1x4x16x16xf32> to vector<4x16x16xf32>
    %22 = vector.shape_cast %19 : vector<4x16x16xf32> to vector<1x4x16x16xf32>
    tpu.vector_store %arg5[%c0_9, %c0_10, %c0_11, %c0_12], %22 {strides = array<i32>} : memref<1x4x16x16xf32, #tpu.memory_space<vmem>>, vector<1x4x16x16xf32>,
    return
  }
  func.func @transform_0(%arg0: i32, %arg1: i32, %arg2: i32) -> (i32, i32, i32, i32) {
    %c0_i32 = arith.constant 0 : i32
    %c0_i32_0 = arith.constant 0 : i32
    return %arg0, %arg2, %arg1, %c0_i32 : i32, i32, i32, i32
  }
  func.func @transform_1(%arg0: i32, %arg1: i32, %arg2: i32) -> (i32, i32, i32, i32) {
    %c0_i32 = arith.constant 0 : i32
    %c0_i32_0 = arith.constant 0 : i32
    %c0_i32_1 = arith.constant 0 : i32
    return %arg0, %c0_i32, %arg1, %c0_i32_0 : i32, i32, i32, i32
  }
  func.func @transform_2(%arg0: i32, %arg1: i32, %arg2: i32) -> (i32, i32, i32, i32) {
    %c0_i32 = arith.constant 0 : i32
    %c0_i32_0 = arith.constant 0 : i32
    return %arg0, %arg2, %arg1, %c0_i32 : i32, i32, i32, i32
  }
}

</mosaic_0001>

<llo_original>
// kernel: tpu_custom_call.1
$region0: #{tpu_custom_call.1}
  #allocation0 [shape = 'u32[]', space=smem, size = 0x4, offset = 0x4, fixed_abs, tag = 'smem constant byte address 0x4 - core index']
  #allocation1 [shape = 'u32[144,128]{1,0:T(1,128)}', space=vmem, size = 0x12000, scoped, tag = 'internal scratch']
  %s0 = inlined_call_operand.hbm [shape: f32[2,4,16,16], index: 0, kind: input, shape index: {}]
  %s1 = inlined_call_operand.hbm [shape: s8[2,1,16,16], index: 1, kind: input, shape index: {}]
  %s2 = inlined_call_operand.hbm [shape: f32[2,4,16,16], index: 2, kind: output, shape index: {}]
  %s3 = sld [smem:[#allocation0]]
  $region49: #{tpu_custom_call.1} parent=0
    _
  %s5 = ssub.s32 1, %s3
  %s6 = scalar_select 0, %s5, %s3
  $region1: #{tpu_custom_call.1} parent=0
    #allocation2 [shape = 'u8[65536]{0}', space=vmem, size = 0x10000, scoped, tag = 'input window, operand 0']
    #allocation3 [shape = 's32[2]{0}', space=sflag, size = 0x8, scoped, tag = 'scoped memory for tpu_custom_call.1']
    #allocation4 [shape = 's32[2]{0}', space=sflag, size = 0x8, scoped, tag = 'scoped memory for tpu_custom_call.1']
    #allocation5 [shape = 'u8[4096]{0}', space=vmem, size = 0x1000, scoped, tag = 'input window, operand 1']
    #allocation6 [shape = 's32[2]{0}', space=sflag, size = 0x8, scoped, tag = 'scoped memory for tpu_custom_call.1']
    #allocation7 [shape = 'u8[65536]{0}', space=vmem, size = 0x10000, scoped, tag = 'output window, operand 0']
    %7 = vsyncpa [#allocation3], 0
    %s8 = scalar_lea.sflag [#allocation3], 1
    %9 = vsyncpa %s8, 0
    %10 = vsyncpa [#allocation6], 0
    %s11 = scalar_lea.sflag [#allocation6], 1
    %12 = vsyncpa %s11, 0
    %13 = vsyncpa [#allocation4], 0
    %s14 = scalar_lea.sflag [#allocation4], 1
    %15 = vsyncpa %s14, 0
    loop: start=0, step=1, limit=4
    $region2: #{tpu_custom_call.1} parent=1 // loop_pre_header
      _
    $region3: #{tpu_custom_call.1} parent=1 // loop_header
      %s17 = sphi 0, %s21
      %p18 = scmp.ge.s32.totalorder %s17, 4
      %s24 = sphi 0, %s43
      %s25 = sphi 0, %s39
      %s26 = sphi 0, %s35
      %s27 = sphi 0, %s24
      %s28 = sphi 0, %s25
      %s29 = sphi 0, %s26
      %s30 = sphi 0, %s27
      %s31 = sphi 0, %s28
      %s32 = sphi 0, %s29
      %s50 = sphi 0, %s52
      %s53 = sphi 0, %s50
      %s54 = sphi 0, %s53
      %s70 = sphi 0, %s54
      %s78 = sphi 0, %s80
      %s81 = sphi 0, %s78
      %s82 = sphi 0, %s81
      %s98 = sphi 0, %s82
      %s108 = sphi 0, %s110
      %s111 = sphi 0, %s108
      %s112 = sphi 0, %s111
      %s128 = sphi 0, %s112
    $region4: #{tpu_custom_call.1} parent=1 // loop_header_branch
      %20 = sbr.rel (%p18) target = $region8
    $region5: #{tpu_custom_call.1} parent=1 // loop_body
      %s22 = ssub.s32 %s17, 1
      %s23 = ssub.s32 %s17, 2
      %s33 = sadd.s32 1, %s26
      %p34 = scmp.ge.s32.totalorder %s33, 1
      %s35 = scalar_select %p34, 0, %s33
      %s36 = sadd.s32 1, %s25
      %s37 = scalar_select %p34, %s36, %s25
      %p38 = scmp.ge.s32.totalorder %s37, 1
      %s39 = scalar_select %p38, 0, %s37
      %s40 = sadd.s32 1, %s24
      %s41 = scalar_select %p38, %s40, %s24
      %p42 = scmp.ge.s32.totalorder %s41, 2
      %s43 = scalar_select %p42, 0, %s41
      %s44 = ssub.s32 %s24, %s43
      %s45 = ssub.s32 %s26, %s35
      %s46 = sor.u32 %s44, %s45
      %s47 = ssub.s32 %s25, %s39
      %s48 = sor.u32 %s46, %s47
      %p49 = scmp.eq.s32.totalorder %s48, 0
      %s51 = sadd.s32 %s50, 1
      %s52 = scalar_select %p49, %s50, %s51
      %p55 = pneg %p49
      %p56 = scmp.eq.s32.totalorder %s17, 1
      %p57 = por %p55, %p56
      %p58 = scmp.ne.s32.totalorder %s50, %s53
      %p59 = scmp.eq.s32.totalorder %s17, 0
      %p60 = por %p58, %p59
      %p61 = scmp.ne.s32.totalorder %s50, %s53
      %p62 = scmp.eq.s32.totalorder %s22, 1
      %p63 = por %p61, %p62
      %p64 = scmp.ne.s32.totalorder %s53, %s54
      %p65 = scmp.eq.s32.totalorder %s22, 0
      %p66 = por %p64, %p65
      %p67 = scmp.ne.s32.totalorder %s53, %s54
      %p68 = scmp.eq.s32.totalorder %s23, 1
      %p69 = por %p67, %p68
      %p71 = scmp.ne.s32.totalorder %s54, %s70
      %p72 = scmp.eq.s32.totalorder %s23, 0
      %p73 = por %p71, %p72
      %s74 = ssub.s32 %s24, %s43
      %s75 = ssub.s32 %s25, %s39
      %s76 = sor.u32 %s74, %s75
      %p77 = scmp.eq.s32.totalorder %s76, 0
      %s79 = sadd.s32 %s78, 1
      %s80 = scalar_select %p77, %s78, %s79
      %p83 = pneg %p77
      %p84 = scmp.eq.s32.totalorder %s17, 1
      %p85 = por %p83, %p84
      %p86 = scmp.ne.s32.totalorder %s78, %s81
      %p87 = scmp.eq.s32.totalorder %s17, 0
      %p88 = por %p86, %p87
      %p89 = scmp.ne.s32.totalorder %s78, %s81
      %p90 = scmp.eq.s32.totalorder %s22, 1
      %p91 = por %p89, %p90
      %p92 = scmp.ne.s32.totalorder %s81, %s82
      %p93 = scmp.eq.s32.totalorder %s22, 0
      %p94 = por %p92, %p93
      %p95 = scmp.ne.s32.totalorder %s81, %s82
      %p96 = scmp.eq.s32.totalorder %s23, 1
      %p97 = por %p95, %p96
      %p99 = scmp.ne.s32.totalorder %s82, %s98
      %p100 = scmp.eq.s32.totalorder %s23, 0
      %p101 = por %p99, %p100
      %s102 = ssub.s32 %s24, %s43
      %s103 = ssub.s32 %s26, %s35
      %s104 = sor.u32 %s102, %s103
      %s105 = ssub.s32 %s25, %s39
      %s106 = sor.u32 %s104, %s105
      %p107 = scmp.eq.s32.totalorder %s106, 0
      %s109 = sadd.s32 %s108, 1
      %s110 = scalar_select %p107, %s108, %s109
      %p113 = pneg %p107
      %p114 = scmp.eq.s32.totalorder %s17, 1
      %p115 = por %p113, %p114
      %p116 = scmp.ne.s32.totalorder %s108, %s111
      %p117 = scmp.eq.s32.totalorder %s17, 0
      %p118 = por %p116, %p117
      %p119 = scmp.ne.s32.totalorder %s108, %s111
      %p120 = scmp.eq.s32.totalorder %s22, 1
      %p121 = por %p119, %p120
      %p122 = scmp.ne.s32.totalorder %s111, %s112
      %p123 = scmp.eq.s32.totalorder %s22, 0
      %p124 = por %p122, %p123
      %p125 = scmp.ne.s32.totalorder %s111, %s112
      %p126 = scmp.eq.s32.totalorder %s23, 1
      %p127 = por %p125, %p126
      %p129 = scmp.ne.s32.totalorder %s112, %s128
      %p130 = scmp.eq.s32.totalorder %s23, 0
      %p131 = por %p129, %p130
      %p132 = scmp.le.s32.totalorder 1, %s17
      %p133 = scmp.lt.s32.totalorder %s17, 3
      %p134 = pnand %p132, %p133
      %p135 = pneg %p134
      // Predicated region
      $region9: #{tpu_custom_call.1} parent=5 // pred_check
        _
      $region10: #{tpu_custom_call.1} parent=5 // pred_check_branch
        %137 = sbr.rel (%p134) target = $region12
      $region11: #{tpu_custom_call.1} parent=5 // pred_region
        %s138 = ssub.s32 %s17, 1
      $region12: #{tpu_custom_call.1} parent=5 // pred_fallthru
        _
      %p139 = scmp.lt.s32.totalorder %s17, 2
      // Predicated region
      $region13: #{tpu_custom_call.1} parent=5 // pred_check
        %p140 = pneg %p139
      $region14: #{tpu_custom_call.1} parent=5 // pred_check_branch
        %142 = sbr.rel (%p140) target = $region16
      $region15: #{tpu_custom_call.1} parent=5 // pred_region
        // Predicated region
        $region17: #{tpu_custom_call.1} parent=15 // pred_check
          %p143 = pneg %p60
        $region18: #{tpu_custom_call.1} parent=15 // pred_check_branch
          %145 = sbr.rel (%p143) target = $region20
        $region19: #{tpu_custom_call.1} parent=15 // pred_region
          %s146 = sand.u32 %s50, 1
          %s147 = scalar_lea.sflag [#allocation3], %s146
          %s148 = sand.u32 %s50, 1
          %s149 = smul.addr %s148, 64
          %s150 = scalar_lea.vmem [#allocation2], %s149
          %s151 = smul.u32 4, %s26
          %s152 = smul.u32 2, %s25
          %s154 = ssub.s32 1024, 1024
          %155 = vsyncadd %s147, %s154
          %s156 = smul.addr %s151, 2
          %s157 = sadd.s32 %s152, %s156
          %s158 = smul.addr %s24, 8
          %s159 = sadd.s32 %s157, %s158
          %s160 = smul.addr %s159, 128
          %s161 = scalar_lea.hbm %s0, %s160
          %s162 = sshll.u32 %s150, 4
          %s163 = int_to_ptr.vmem [resolvable:$true] %s162
          %168 = dma.hbm_to_vmem [thread:$0]  %s161, 1024, %s163, %s147, 128, 128, 8
        $region20: #{tpu_custom_call.1} parent=15 // pred_fallthru
          _
        // Predicated region
        $region21: #{tpu_custom_call.1} parent=15 // pred_check
          %p169 = pneg %p88
        $region22: #{tpu_custom_call.1} parent=15 // pred_check_branch
          %171 = sbr.rel (%p169) target = $region24
        $region23: #{tpu_custom_call.1} parent=15 // pred_region
          %s172 = sand.u32 %s78, 1
          %s173 = scalar_lea.sflag [#allocation6], %s172
          %s174 = sand.u32 %s78, 1
          %s175 = smul.addr %s174, 4
          %s176 = scalar_lea.vmem [#allocation5], %s175
          %s177 = smul.u32 2, %s25
          %s179 = ssub.s32 64, 64
          %180 = vsyncadd %s173, %s179
          %s181 = smul.addr %s24, 2
          %s182 = sadd.s32 %s177, %s181
          %s183 = smul.addr %s182, 32
          %s184 = scalar_lea.hbm %s1, %s183
          %s185 = sshll.u32 %s176, 4
          %s186 = int_to_ptr.vmem [resolvable:$true] %s185
          %191 = dma.hbm_to_vmem [thread:$0]  %s184, 64, %s186, %s173, 32, 32, 2
        $region24: #{tpu_custom_call.1} parent=15 // pred_fallthru
          _
      $region16: #{tpu_custom_call.1} parent=5 // pred_fallthru
        _
      %p192 = scmp.le.s32.totalorder 1, %s17
      %p193 = scmp.lt.s32.totalorder %s17, 3
      %p194 = pnand %p192, %p193
      %p195 = pneg %p194
      // Predicated region
      $region25: #{tpu_custom_call.1} parent=5 // pred_check
        _
      $region26: #{tpu_custom_call.1} parent=5 // pred_check_branch
        %197 = sbr.rel (%p194) target = $region28
      $region27: #{tpu_custom_call.1} parent=5 // pred_region
        %s198 = ssub.s32 %s17, 1
        %s199 = sand.u32 %s53, 1
        %s200 = scalar_lea.sflag [#allocation3], %s199
        %s201 = sand.u32 %s53, 1
        %s202 = smul.addr %s201, 64
        %s203 = scalar_lea.vmem [#allocation2], %s202
        // Predicated region
        $region29: #{tpu_custom_call.1} parent=27 // pred_check
          %p204 = pneg %p66
        $region30: #{tpu_custom_call.1} parent=27 // pred_check_branch
          %206 = sbr.rel (%p204) target = $region32
        $region31: #{tpu_custom_call.1} parent=27 // pred_region
          %207 = dma.done %s200, 1024
        $region32: #{tpu_custom_call.1} parent=27 // pred_fallthru
          _
        %s208 = sand.u32 %s81, 1
        %s209 = scalar_lea.sflag [#allocation6], %s208
        %s210 = sand.u32 %s81, 1
        %s211 = smul.addr %s210, 4
        %s212 = scalar_lea.vmem [#allocation5], %s211
        // Predicated region
        $region33: #{tpu_custom_call.1} parent=27 // pred_check
          %p213 = pneg %p94
        $region34: #{tpu_custom_call.1} parent=27 // pred_check_branch
          %215 = sbr.rel (%p213) target = $region36
        $region35: #{tpu_custom_call.1} parent=27 // pred_region
          %216 = dma.done %s209, 64
        $region36: #{tpu_custom_call.1} parent=27 // pred_fallthru
          _
        %s217 = sand.u32 %s53, 1
        %s218 = scalar_lea.sflag [#allocation3], %s217
        %s219 = sand.u32 %s53, 1
        %s220 = smul.addr %s219, 64
        %s221 = scalar_lea.vmem [#allocation2], %s220
        %p222 = pneg %p66
        %p223 = pneg %p63
        %s224 = sand.u32 %s81, 1
        %s225 = scalar_lea.sflag [#allocation6], %s224
        %s226 = sand.u32 %s81, 1
        %s227 = smul.addr %s226, 4
        %s228 = scalar_lea.vmem [#allocation5], %s227
        %p229 = pneg %p94
        %p230 = pneg %p91
        %p231 = pneg %p124
        %p232 = pneg %p121
        %s233 = sand.u32 %s111, 1
        %s234 = scalar_lea.sflag [#allocation4], %s233
        %s235 = sand.u32 %s111, 1
        %s236 = smul.addr %s235, 64
        %s237 = scalar_lea.vmem [#allocation7], %s236
        %s238 = smul.u32 4, %s29
        %s239 = smul.u32 2, %s28
        %s240 = smul.u32 2, %s28
        %s241 = smul.u32 4, %s29
        %s242 = smul.u32 2, %s28
        %v245 = vld [vmem:[%s203] sm:$0xff]
        %v246 = vld [vmem:[%s203 + $0x8] sm:$0xff]
        %v247 = vld [vmem:[%s203 + $0x10] sm:$0xff]
        %v248 = vld [vmem:[%s203 + $0x18] sm:$0xff]
        %v249 = vld [vmem:[%s203 + $0x20] sm:$0xff]
        %v250 = vld [vmem:[%s203 + $0x28] sm:$0xff]
        %v251 = vld [vmem:[%s203 + $0x30] sm:$0xff]
        %v252 = vld [vmem:[%s203 + $0x38] sm:$0xff]
        %v253 = vld [vmem:[%s212] sm:$0x3]
        %v254 = vld [vmem:[%s212 + $0x2] sm:$0x3]
        %vm255 = vnez %v253
        %vm256 = vnez %v254
        %v257 = vsel %vm255, 16843009, 0
        %v258 = vsel %vm256, 16843009, 0
        %v259 = vunpack.c.0.s8 %v257
        %v260 = vunpack.c.0.s8 %v258
        %vm261 = vcmp.ne.s32.totalorder %v259, 0
        %vm262 = vcmp.ne.s32.totalorder %v260, 0
        %v263 = vsel %vm261, 1, 0
        %v264 = vsel %vm262, 1, 0
        %vm265 = vcmp.eq.s32.totalorder %v263, 1
        %vm266 = vcmp.eq.s32.totalorder %v264, 1
        %v267 = vsel %vm265, -3.4028235e+38, %v245
        %v268 = vsel %vm266, -3.4028235e+38, %v246
        %v269 = vsel %vm265, -3.4028235e+38, %v247
        %v270 = vsel %vm266, -3.4028235e+38, %v248
        %v271 = vsel %vm265, -3.4028235e+38, %v249
        %v272 = vsel %vm266, -3.4028235e+38, %v250
        %v273 = vsel %vm265, -3.4028235e+38, %v251
        %v274 = vsel %vm266, -3.4028235e+38, %v252
        %vm275 = vcmask 130048
        %v276 = vsel %vm275, %v267, -inf
        %277 = vmax.xlane.f32.xlu0 %v276
        %v278 = vpop.xlane.xlu0 %277
        %v279 = vsel %vm275, %v268, -inf
        %280 = vmax.xlane.f32.xlu0 %v279
        %v281 = vpop.xlane.xlu0 %280
        %v282 = vsel %vm275, %v269, -inf
        %283 = vmax.xlane.f32.xlu0 %v282
        %v284 = vpop.xlane.xlu0 %283
        %v285 = vsel %vm275, %v270, -inf
        %286 = vmax.xlane.f32.xlu0 %v285
        %v287 = vpop.xlane.xlu0 %286
        %v288 = vsel %vm275, %v271, -inf
        %289 = vmax.xlane.f32.xlu0 %v288
        %v290 = vpop.xlane.xlu0 %289
        %v291 = vsel %vm275, %v272, -inf
        %292 = vmax.xlane.f32.xlu0 %v291
        %v293 = vpop.xlane.xlu0 %292
        %v294 = vsel %vm275, %v273, -inf
        %295 = vmax.xlane.f32.xlu0 %v294
        %v296 = vpop.xlane.xlu0 %295
        %v297 = vsel %vm275, %v274, -inf
        %298 = vmax.xlane.f32.xlu0 %v297
        %v299 = vpop.xlane.xlu0 %298
        %v300 = vsub.f32 %v267, %v278
        %v301 = vsub.f32 %v268, %v281
        %v302 = vsub.f32 %v269, %v284
        %v303 = vsub.f32 %v270, %v287
        %v304 = vsub.f32 %v271, %v290
        %v305 = vsub.f32 %v272, %v293
        %v306 = vsub.f32 %v273, %v296
        %v307 = vsub.f32 %v274, %v299
        %v308 = vmul.f32 %v300, 1.442695
        %v309 = vpow.pop %v308
        %v310 = vmul.f32 %v301, 1.442695
        %v311 = vpow.pop %v310
        %v312 = vmul.f32 %v302, 1.442695
        %v313 = vpow.pop %v312
        %v314 = vmul.f32 %v303, 1.442695
        %v315 = vpow.pop %v314
        %v316 = vmul.f32 %v304, 1.442695
        %v317 = vpow.pop %v316
        %v318 = vmul.f32 %v305, 1.442695
        %v319 = vpow.pop %v318
        %v320 = vmul.f32 %v306, 1.442695
        %v321 = vpow.pop %v320
        %v322 = vmul.f32 %v307, 1.442695
        %v323 = vpow.pop %v322
        %v324 = vsel %vm275, %v309, 0.0
        %325 = vadd.xlane.f32.xlu0 %v324
        %v326 = vpop.xlane.xlu0 %325
        %v327 = vsel %vm275, %v311, 0.0
        %328 = vadd.xlane.f32.xlu0 %v327
        %v329 = vpop.xlane.xlu0 %328
        %v330 = vsel %vm275, %v313, 0.0
        %331 = vadd.xlane.f32.xlu0 %v330
        %v332 = vpop.xlane.xlu0 %331
        %v333 = vsel %vm275, %v315, 0.0
        %334 = vadd.xlane.f32.xlu0 %v333
        %v335 = vpop.xlane.xlu0 %334
        %v336 = vsel %vm275, %v317, 0.0
        %337 = vadd.xlane.f32.xlu0 %v336
        %v338 = vpop.xlane.xlu0 %337
        %v339 = vsel %vm275, %v319, 0.0
        %340 = vadd.xlane.f32.xlu0 %v339
        %v341 = vpop.xlane.xlu0 %340
        %v342 = vsel %vm275, %v321, 0.0
        %343 = vadd.xlane.f32.xlu0 %v342
        %v344 = vpop.xlane.xlu0 %343
        %v345 = vsel %vm275, %v323, 0.0
        %346 = vadd.xlane.f32.xlu0 %v345
        %v347 = vpop.xlane.xlu0 %346
        %v348 = vrcp.pop %v326
        %v349 = vrcp.pop %v329
        %v350 = vrcp.pop %v332
        %v351 = vrcp.pop %v335
        %v352 = vrcp.pop %v338
        %v353 = vrcp.pop %v341
        %v354 = vrcp.pop %v344
        %v355 = vrcp.pop %v347
        %v356 = vmul.f32 %v309, %v348
        %v357 = vmul.f32 %v311, %v349
        %v358 = vmul.f32 %v313, %v350
        %v359 = vmul.f32 %v315, %v351
        %v360 = vmul.f32 %v317, %v352
        %v361 = vmul.f32 %v319, %v353
        %v362 = vmul.f32 %v321, %v354
        %v363 = vmul.f32 %v323, %v355
        %364 = vst.msk [vmem:[%s237] sm:$0xff] %vm275, %v356
        %365 = vst.msk [vmem:[%s237 + $0x8] sm:$0xff] %vm275, %v357
        %366 = vst.msk [vmem:[%s237 + $0x10] sm:$0xff] %vm275, %v358
        %367 = vst.msk [vmem:[%s237 + $0x18] sm:$0xff] %vm275, %v359
        %368 = vst.msk [vmem:[%s237 + $0x20] sm:$0xff] %vm275, %v360
        %369 = vst.msk [vmem:[%s237 + $0x28] sm:$0xff] %vm275, %v361
        %370 = vst.msk [vmem:[%s237 + $0x30] sm:$0xff] %vm275, %v362
        %371 = vst.msk [vmem:[%s237 + $0x38] sm:$0xff] %vm275, %v363
        %s372 = sand.u32 %s111, 1
        %s373 = scalar_lea.sflag [#allocation4], %s372
        %s374 = sand.u32 %s111, 1
        %s375 = smul.addr %s374, 64
        %s376 = scalar_lea.vmem [#allocation7], %s375
        // Predicated region
        $region37: #{tpu_custom_call.1} parent=27 // pred_check
          %p377 = pneg %p121
        $region38: #{tpu_custom_call.1} parent=27 // pred_check_branch
          %379 = sbr.rel (%p377) target = $region40
        $region39: #{tpu_custom_call.1} parent=27 // pred_region
          %s380 = smul.u32 4, %s29
          %s381 = smul.u32 2, %s28
          %s383 = ssub.s32 1024, 1024
          %384 = vsyncadd %s373, %s383
          %s385 = smul.addr %s380, 2
          %s386 = sadd.s32 %s381, %s385
          %s387 = smul.addr %s27, 8
          %s388 = sadd.s32 %s386, %s387
          %s389 = smul.addr %s388, 128
          %s390 = scalar_lea.hbm %s2, %s389
          %s391 = sshll.u32 %s376, 4
          %s392 = int_to_ptr.vmem [resolvable:$true] %s391
          %397 = dma.vmem_to_hbm [thread:$0]  %s392, 1024, %s390, %s373, 128, 128, 8
        $region40: #{tpu_custom_call.1} parent=27 // pred_fallthru
          _
      $region28: #{tpu_custom_call.1} parent=5 // pred_fallthru
        _
      %p398 = scmp.le.s32.totalorder 2, %s17
      // Predicated region
      $region41: #{tpu_custom_call.1} parent=5 // pred_check
        %p399 = pneg %p398
      $region42: #{tpu_custom_call.1} parent=5 // pred_check_branch
        %401 = sbr.rel (%p399) target = $region44
      $region43: #{tpu_custom_call.1} parent=5 // pred_region
        %s402 = ssub.s32 %s17, 2
        // Predicated region
        $region45: #{tpu_custom_call.1} parent=43 // pred_check
          %p403 = pneg %p127
        $region46: #{tpu_custom_call.1} parent=43 // pred_check_branch
          %405 = sbr.rel (%p403) target = $region48
        $region47: #{tpu_custom_call.1} parent=43 // pred_region
          %s406 = sand.u32 %s112, 1
          %s407 = scalar_lea.sflag [#allocation4], %s406
          %s408 = sand.u32 %s112, 1
          %s409 = smul.addr %s408, 64
          %s410 = scalar_lea.vmem [#allocation7], %s409
          %411 = dma.done %s407, 1024
        $region48: #{tpu_custom_call.1} parent=43 // pred_fallthru
          _
      $region44: #{tpu_custom_call.1} parent=5 // pred_fallthru
        _
    $region6: #{tpu_custom_call.1} parent=1 // loop_footer
      %s21 = sadd.s32 1, %s17
    $region7: #{tpu_custom_call.1} parent=1 // loop_footer_branch
      %16 = sbr.rel target = $region3
    $region8: #{tpu_custom_call.1} parent=1 // loop_exit
      _
    %412 = vsyncpa [#allocation3], 1
    %s413 = scalar_lea.sflag [#allocation3], 1
    %414 = vsyncpa %s413, 1
    %415 = vsyncpa [#allocation6], 1
    %s416 = scalar_lea.sflag [#allocation6], 1
    %417 = vsyncpa %s416, 1
    %418 = vsyncpa [#allocation4], 1
    %s419 = scalar_lea.sflag [#allocation4], 1
    %420 = vsyncpa %s419, 1

</llo_original>
